<compile_context>
chip_gen: v7x
topology: tpu7x:2x2x1
jax: 0.10.0
libtpu: 0.0.40
codegen_flags: <defaults>
</compile_context>

<pallas_src>
import jax
import jax.numpy as jnp
from jax.experimental import pallas as pl
from jax.experimental.pallas import tpu as pltpu


def _linear_sigmoid_kernel(x_ref, w_ref, b_ref, o_ref):
    # x: (tb, K) f32, w: (K, tn) bf16, b: (1, tn) f32, o: (tb, tn).
    # bf16 x bf16 matmul, f32 accumulate on the MXU; f32 epilogue (v5e-safe).
    x_bf = x_ref[...].astype(jnp.bfloat16)
    w_bf = w_ref[...].astype(jnp.bfloat16)
    acc = jnp.dot(x_bf, w_bf, preferred_element_type=jnp.float32)
    acc = acc + b_ref[...]
    o_ref[...] = jax.nn.sigmoid(acc).astype(o_ref.dtype)


def _linear_sigmoid_kernel_q8(x_ref, w_ref, s_ref, b_ref, o_ref):
    # int8-stored weight: values in [-127, 127] are exact in bf16, so the cast is
    # lossless; the per-output-channel dequant scale is fused into the epilogue as a
    # single VPU multiply on the (tb, tn) f32 accumulator, before the bias add.
    x_bf = x_ref[...].astype(jnp.bfloat16)
    w_bf = w_ref[...].astype(jnp.bfloat16)
    acc = jnp.dot(x_bf, w_bf, preferred_element_type=jnp.float32)
    acc = acc * s_ref[...] + b_ref[...]
    o_ref[...] = jax.nn.sigmoid(acc).astype(o_ref.dtype)


def prepare_decoder_params(weight, bias, *, quantize_int8=False):
    """One-time parameter prep (do at init, NOT per forward call).

    weight: (input_dims, latent_dims) — PyTorch nn.Linear layout (out, in).
    Returns (w, w_scale, bias2d):
      * default:        w = (K, N) bf16,  w_scale = None
      * quantize_int8:  w = (K, N) int8,  w_scale = (1, N) f32 per-output-channel
        (recommended for v5e/v6e where the weight read dominates HBM traffic).
    bias2d is (1, N) f32.
    """
    w_t = weight.T.astype(jnp.float32)                  # (K, N), lane-dense N last
    bias2d = bias.astype(jnp.float32).reshape(1, -1)    # (1, N)
    if not quantize_int8:
        return w_t.astype(jnp.bfloat16), None, bias2d
    max_abs = jnp.max(jnp.abs(w_t), axis=0, keepdims=True)          # (1, N)
    scale = jnp.where(max_abs > 0.0, max_abs / 127.0, 1.0)
    w_q = jnp.clip(jnp.round(w_t / scale), -127.0, 127.0).astype(jnp.int8)
    return w_q, scale.astype(jnp.float32), bias2d


def autoencoder_gen_forward(x, w, bias2d, w_scale=None, *, tn=None, tb=None,
                            out_dtype=jnp.float32):
    """x: (B, latent_dims) f32; w: (latent_dims, input_dims) bf16 (or int8 with
    w_scale (1, input_dims) f32); bias2d: (1, input_dims) f32.
    Returns (B, 1, 64, 64) out_dtype.

    Defaults collapse to a single-step grid (best on v5e/v6e/v7x at small B).  For
    large B, pass tb (multiple of 8, ideally 128/256) and/or a smaller tn (multiple
    of 128); the weight index_map is independent of the (inner) B grid axis, so the
    (K, tn) weight tile stays VMEM-resident across B steps with no re-DMA.
    """
    B, K = x.shape
    Kw, N = w.shape
    assert Kw == K
    assert N == 64 * 64, "input_dims must be 4096 for the (-1, 1, 64, 64) reshape"

    if tn is None:
        tn = N
    if tb is None:
        tb = B if B <= 256 else 256
    assert N % tn == 0 and tn % 128 == 0              # lane-dense, unmasked stores
    assert B % tb == 0 and (tb == B or tb % 8 == 0)   # (8, 128) sublane rule
    n_n, n_b = N // tn, B // tb

    quantized = w_scale is not None
    kernel = _linear_sigmoid_kernel_q8 if quantized else _linear_sigmoid_kernel

    # N axis OUTER, B axis INNER: weight / scale / bias block indices depend only on
    # the outer axis, so Pallas skips re-DMAing them across consecutive B steps.
    in_specs = [pl.BlockSpec((tb, K), lambda j, i: (i, 0)),    # activations
                pl.BlockSpec((K, tn), lambda j, i: (0, j))]    # W^T tile
    if quantized:
        in_specs.append(pl.BlockSpec((1, tn), lambda j, i: (0, j)))  # dequant scale
    in_specs.append(pl.BlockSpec((1, tn), lambda j, i: (0, j)))      # bias tile
    out_spec = pl.BlockSpec((tb, tn), lambda j, i: (i, j))

    args = (x, w, w_scale, bias2d) if quantized else (x, w, bias2d)

    def _isz(a):
        return jnp.dtype(a.dtype).itemsize

    # Bandwidth/latency-bound, sub-microsecond op: tell XLA so it can overlap it.
    cost = pl.CostEstimate(
        flops=2 * B * K * N,
        transcendentals=B * N,
        bytes_accessed=(w.size * _isz(w)
                        + x.size * _isz(x) * n_n        # x revisited once per N tile
                        + bias2d.size * 4
                        + (w_scale.size * 4 if quantized else 0)
                        + B * N * jnp.dtype(out_dtype).itemsize),
    )

    out = pl.pallas_call(
        kernel,
        out_shape=jax.ShapeDtypeStruct((B, N), out_dtype),
        grid_spec=pl.GridSpec(
            grid=(n_n, n_b),
            in_specs=in_specs,
            out_specs=out_spec,
        ),
        compiler_params=pltpu.CompilerParams(
            dimension_semantics=("parallel", "arbitrary"),
            # Launch-overhead-bound op: let XLA fuse the producer of x (operand 0)
            # into the custom call instead of materializing it as a separate tiny op.
            allow_input_fusion=[True] + [False] * (len(args) - 1),
        ),
        cost_estimate=cost,
    )(*args)

    # Free metadata reshape to NCHW (B, 1, 64, 64), exactly like the PyTorch module.
    return out.reshape(-1, 1, 64, 64)


if __name__ == "__main__":
    latent_dims = 32
    input_dims = 64 * 64   # forward's reshape to (-1, 1, 64, 64) implies 4096
    batch = 2

    key = jax.random.PRNGKey(0)
    kx, kw, kb = jax.random.split(key, 3)

    # deterministic synthetic parameters (PyTorch nn.Linear layout: (out, in))
    weight = jax.random.normal(kw, (input_dims, latent_dims), jnp.float32) * 0.05
    bias = jax.random.normal(kb, (input_dims,), jnp.float32) * 0.05
    x = jax.random.normal(kx, (batch, latent_dims), jnp.float32)

    ref_f32 = jax.nn.sigmoid(x @ weight.T + bias).reshape(-1, 1, 64, 64)

    # --- default (portable, v7x-safe) bf16-weight path -------------------------------
    w_bf16, _, bias2d = prepare_decoder_params(weight, bias)
    fwd = jax.jit(autoencoder_gen_forward)
    z = fwd(x, w_bf16, bias2d)
    jax.block_until_ready(z)
    assert z.shape == (batch, 1, 64, 64)
    assert z.dtype == jnp.float32

    ref_bf16w = jax.nn.sigmoid(
        x @ w_bf16.astype(jnp.float32) + bias
    ).reshape(-1, 1, 64, 64)
    assert jnp.allclose(z, ref_bf16w, atol=2e-3, rtol=2e-3)
    assert jnp.allclose(z, ref_f32, atol=5e-3, rtol=5e-3)

    # --- opt-in int8-weight path (v5e/v6e: halves the dominant HBM weight read) ------
    w_q8, w_scale, _ = prepare_decoder_params(weight, bias, quantize_int8=True)
    z_q8 = jax.jit(autoencoder_gen_forward)(x, w_q8, bias2d, w_scale)
    jax.block_until_ready(z_q8)
    assert z_q8.shape == (batch, 1, 64, 64)

    w_deq = w_q8.astype(jnp.float32) * w_scale           # (K, N), dequantized
    ref_q8 = jax.nn.sigmoid(x @ w_deq + bias).reshape(-1, 1, 64, 64)
    assert jnp.allclose(z_q8, ref_q8, atol=3e-3, rtol=3e-3)
    assert jnp.allclose(z_q8, ref_f32, atol=1e-2, rtol=1e-2)

    print("KERNEL_OK")
</pallas_src>

<mosaic_0001>
module attributes {stable_mosaic.version = 11 : i64} {
  func.func @_linear_sigmoid_kernel(%arg0: i32, %arg1: i32, %arg2: memref<2x32xf32, #tpu.memory_space<vmem>>, %arg3: memref<32x4096xbf16, #tpu.memory_space<vmem>>, %arg4: memref<1x4096xf32, #tpu.memory_space<vmem>>, %arg5: memref<2x4096xf32, #tpu.memory_space<vmem>>) attributes {dimension_semantics = [#tpu.dimension_semantics<parallel>, #tpu.dimension_semantics<arbitrary>], iteration_bounds = array<i64: 1, 1>, scalar_prefetch = 0 : i64, scratch_operands = 0 : i64, tpu.core_type = #tpu.core_type<tc>, window_params = [{transform_indices = @transform_0, window_bounds = array<i64: 2, 32>}, {transform_indices = @transform_1, window_bounds = array<i64: 32, 4096>}, {transform_indices = @transform_2, window_bounds = array<i64: 1, 4096>}, {transform_indices = @transform_3, window_bounds = array<i64: 2, 4096>}]} {
    %c0 = arith.constant 0 : index
    %c0_0 = arith.constant 0 : index
    %0 = vector.load %arg2[%c0, %c0_0] : memref<2x32xf32, #tpu.memory_space<vmem>>, vector<2x32xf32>
    %1 = arith.truncf %0 : vector<2x32xf32> to vector<2x32xbf16>
    %c0_1 = arith.constant 0 : index
    %c0_2 = arith.constant 0 : index
    %2 = vector.load %arg3[%c0_1, %c0_2] : memref<32x4096xbf16, #tpu.memory_space<vmem>>, vector<32x4096xbf16>
    %cst = arith.constant dense<0.000000e+00> : vector<2x4096xf32>
    %3 = tpu.matmul %1, %2, %cst {dimension_numbers = #tpu.dot_dimension_numbers<[1], [0], [0], [1], [0, 0, 1, 1], [], []>} : vector<2x32xbf16>, vector<32x4096xbf16>, vector<2x4096xf32> -> vector<2x4096xf32>
    %c0_3 = arith.constant 0 : index
    %c0_4 = arith.constant 0 : index
    %4 = vector.load %arg4[%c0_3, %c0_4] : memref<1x4096xf32, #tpu.memory_space<vmem>>, vector<1x4096xf32>
    %5 = vector.broadcast %4 : vector<1x4096xf32> to vector<2x4096xf32>
    %6 = arith.addf %3, %5 : vector<2x4096xf32>
    %7 = arith.negf %6 : vector<2x4096xf32>
    %8 = math.exp %7 : vector<2x4096xf32>
    %cst_5 = arith.constant 1.000000e+00 : f32
    %9 = vector.broadcast %cst_5 : f32 to vector<2x4096xf32>
    %10 = arith.addf %9, %8 : vector<2x4096xf32>
    %11 = arith.divf %9, %10 : vector<2x4096xf32>
    %c0_6 = arith.constant 0 : index
    %c0_7 = arith.constant 0 : index
    %12 = vector.load %arg5[%c0_6, %c0_7] : memref<2x4096xf32, #tpu.memory_space<vmem>>, vector<2x4096xf32>
    tpu.vector_store %arg5[%c0_6, %c0_7], %11 {strides = array<i32>} : memref<2x4096xf32, #tpu.memory_space<vmem>>, vector<2x4096xf32>,
    return
  }
  func.func @transform_0(%arg0: i32, %arg1: i32) -> (i32, i32) {
    %c0_i32 = arith.constant 0 : i32
    %c0_i32_0 = arith.constant 0 : i32
    return %arg1, %c0_i32 : i32, i32
  }
  func.func @transform_1(%arg0: i32, %arg1: i32) -> (i32, i32) {
    %c0_i32 = arith.constant 0 : i32
    %c0_i32_0 = arith.constant 0 : i32
    return %c0_i32, %arg0 : i32, i32
  }
  func.func @transform_2(%arg0: i32, %arg1: i32) -> (i32, i32) {
    %c0_i32 = arith.constant 0 : i32
    %c0_i32_0 = arith.constant 0 : i32
    return %c0_i32, %arg0 : i32, i32
  }
  func.func @transform_3(%arg0: i32, %arg1: i32) -> (i32, i32) {
    %c0_i32 = arith.constant 0 : i32
    return %arg1, %arg0 : i32, i32
  }
}

</mosaic_0001>

<llo_original>
// kernel: autoencoder_gen_forward.1
$region0: #{autoencoder_gen_forward.1}
  #allocation0 [shape = 'u32[]', space=smem, size = 0x4, offset = 0x4, fixed_abs, tag = 'smem constant byte address 0x4 - core index']
  #allocation1 [shape = 'u32[144,128]{1,0:T(1,128)}', space=vmem, size = 0x12000, scoped, tag = 'internal scratch']
  %s0 = inlined_call_operand.hbm [shape: f32[2,32], index: 0, kind: input, shape index: {}]
  %s1 = inlined_call_operand.hbm [shape: bf16[32,4096], index: 1, kind: input, shape index: {}]
  %s2 = inlined_call_operand.hbm [shape: f32[1,4096], index: 2, kind: input, shape index: {}]
  %s3 = inlined_call_operand.vmem [shape: f32[2,4096], index: 3, kind: output, shape index: {}]
  %s4 = sld [smem:[#allocation0]]
  $region34: #{autoencoder_gen_forward.1} parent=0
    _
  %s6 = ssub.s32 1, %s4
  %s7 = scalar_select 0, %s6, %s4
  $region1: #{autoencoder_gen_forward.1} parent=0
    #allocation2 [shape = 'u8[1024]{0}', space=vmem, size = 0x400, scoped, tag = 'input window, operand 0, single buffered']
    #allocation3 [shape = 's32[1]{0}', space=sflag, size = 0x4, scoped, tag = 'scoped memory for autoencoder_gen_forward.1']
    #allocation4 [shape = 'u8[262144]{0}', space=vmem, size = 0x40000, scoped, tag = 'input window, operand 1, single buffered']
    #allocation5 [shape = 's32[1]{0}', space=sflag, size = 0x4, scoped, tag = 'scoped memory for autoencoder_gen_forward.1']
    #allocation6 [shape = 'u8[16384]{0}', space=vmem, size = 0x4000, scoped, tag = 'input window, operand 2, single buffered']
    %8 = vsyncpa [#allocation3], 0
    %9 = vsyncpa [#allocation5], 0
    // Predicated region
    $region2: #{autoencoder_gen_forward.1} parent=1 // pred_check
      _
    $region3: #{autoencoder_gen_forward.1} parent=1 // pred_check_branch
      %11 = sbr.rel (0) target = $region5
    $region4: #{autoencoder_gen_forward.1} parent=1 // pred_region
      %s13 = ssub.s32 32, 32
      %14 = vsyncadd [#allocation3], %s13
      %s16 = sshll.u32 [#allocation2], 4
      %s17 = int_to_ptr.vmem [resolvable:$true] %s16
      %19 = dma.hbm_to_vmem [thread:$0]  %s0, 32, %s17, [#allocation3]
    $region5: #{autoencoder_gen_forward.1} parent=1 // pred_fallthru
      _
    // Predicated region
    $region6: #{autoencoder_gen_forward.1} parent=1 // pred_check
      _
    $region7: #{autoencoder_gen_forward.1} parent=1 // pred_check_branch
      %21 = sbr.rel (0) target = $region9
    $region8: #{autoencoder_gen_forward.1} parent=1 // pred_region
      %s23 = ssub.s32 8192, 8192
      %24 = vsyncadd [#allocation5], %s23
      %s25 = sshll.u32 [#allocation4], 4
      %s26 = int_to_ptr.vmem [resolvable:$true] %s25
      %31 = dma.hbm_to_vmem [thread:$0]  %s1, 8192, %s26, [#allocation5], 2048, 2048, 128
    $region9: #{autoencoder_gen_forward.1} parent=1 // pred_fallthru
      _
    // Predicated region
    $region10: #{autoencoder_gen_forward.1} parent=1 // pred_check
      _
    $region11: #{autoencoder_gen_forward.1} parent=1 // pred_check_branch
      %33 = sbr.rel (0) target = $region13
    $region12: #{autoencoder_gen_forward.1} parent=1 // pred_region
      %s35 = ssub.s32 512, 512
      %36 = vsyncadd [#allocation5], %s35
      %s38 = sshll.u32 [#allocation6], 4
      %s39 = int_to_ptr.vmem [resolvable:$true] %s38
      %41 = dma.hbm_to_vmem [thread:$0]  %s2, 512, %s39, [#allocation5]
    $region13: #{autoencoder_gen_forward.1} parent=1 // pred_fallthru
      _
    // Predicated region
    $region14: #{autoencoder_gen_forward.1} parent=1 // pred_check
      _
    $region15: #{autoencoder_gen_forward.1} parent=1 // pred_check_branch
      %43 = sbr.rel (0) target = $region17
    $region16: #{autoencoder_gen_forward.1} parent=1 // pred_region
      %44 = dma.done [#allocation3], 32
    $region17: #{autoencoder_gen_forward.1} parent=1 // pred_fallthru
      _
    // Predicated region
    $region18: #{autoencoder_gen_forward.1} parent=1 // pred_check
      _
    $region19: #{autoencoder_gen_forward.1} parent=1 // pred_check_branch
      %46 = sbr.rel (0) target = $region21
    $region20: #{autoencoder_gen_forward.1} parent=1 // pred_region
      %47 = dma.done [#allocation5], 8192
    $region21: #{autoencoder_gen_forward.1} parent=1 // pred_fallthru
      _
    // Predicated region
    $region22: #{autoencoder_gen_forward.1} parent=1 // pred_check
      _
    $region23: #{autoencoder_gen_forward.1} parent=1 // pred_check_branch
      %49 = sbr.rel (0) target = $region25
    $region24: #{autoencoder_gen_forward.1} parent=1 // pred_region
      %50 = dma.done [#allocation5], 512
    $region25: #{autoencoder_gen_forward.1} parent=1 // pred_fallthru
      _
    %v52 = vld [vmem:[#allocation2] sm:$0x3]
    %v53 = vpack.c.bf16 %v52, %v52
    %v54 = vld [vmem:[#allocation4] sm:$0xff]
    %v55 = vld [vmem:[#allocation4 + $0x8] sm:$0xff]
    %v56 = vld [vmem:[#allocation4 + $0x10] sm:$0xff]
    %v57 = vld [vmem:[#allocation4 + $0x18] sm:$0xff]
    %v58 = vld [vmem:[#allocation4 + $0x20] sm:$0xff]
    %v59 = vld [vmem:[#allocation4 + $0x28] sm:$0xff]
    %v60 = vld [vmem:[#allocation4 + $0x30] sm:$0xff]
    %v61 = vld [vmem:[#allocation4 + $0x38] sm:$0xff]
    %v62 = vld [vmem:[#allocation4 + $0x40] sm:$0xff]
    %v63 = vld [vmem:[#allocation4 + $0x48] sm:$0xff]
    %v64 = vld [vmem:[#allocation4 + $0x50] sm:$0xff]
    %v65 = vld [vmem:[#allocation4 + $0x58] sm:$0xff]
    %v66 = vld [vmem:[#allocation4 + $0x60] sm:$0xff]
    %v67 = vld [vmem:[#allocation4 + $0x68] sm:$0xff]
    %v68 = vld [vmem:[#allocation4 + $0x70] sm:$0xff]
    %v69 = vld [vmem:[#allocation4 + $0x78] sm:$0xff]
    %v70 = vld [vmem:[#allocation4 + $0x80] sm:$0xff]
    %v71 = vld [vmem:[#allocation4 + $0x88] sm:$0xff]
    %v72 = vld [vmem:[#allocation4 + $0x90] sm:$0xff]
    %v73 = vld [vmem:[#allocation4 + $0x98] sm:$0xff]
    %v74 = vld [vmem:[#allocation4 + $0xa0] sm:$0xff]
    %v75 = vld [vmem:[#allocation4 + $0xa8] sm:$0xff]
    %v76 = vld [vmem:[#allocation4 + $0xb0] sm:$0xff]
    %v77 = vld [vmem:[#allocation4 + $0xb8] sm:$0xff]
    %v78 = vld [vmem:[#allocation4 + $0xc0] sm:$0xff]
    %v79 = vld [vmem:[#allocation4 + $0xc8] sm:$0xff]
    %v80 = vld [vmem:[#allocation4 + $0xd0] sm:$0xff]
    %v81 = vld [vmem:[#allocation4 + $0xd8] sm:$0xff]
    %v82 = vld [vmem:[#allocation4 + $0xe0] sm:$0xff]
    %v83 = vld [vmem:[#allocation4 + $0xe8] sm:$0xff]
    %v84 = vld [vmem:[#allocation4 + $0xf0] sm:$0xff]
    %v85 = vld [vmem:[#allocation4 + $0xf8] sm:$0xff]
    %v86 = vld [vmem:[#allocation4 + $0x100] sm:$0xff]
    %v87 = vld [vmem:[#allocation4 + $0x108] sm:$0xff]
    %v88 = vld [vmem:[#allocation4 + $0x110] sm:$0xff]
    %v89 = vld [vmem:[#allocation4 + $0x118] sm:$0xff]
    %v90 = vld [vmem:[#allocation4 + $0x120] sm:$0xff]
    %v91 = vld [vmem:[#allocation4 + $0x128] sm:$0xff]
    %v92 = vld [vmem:[#allocation4 + $0x130] sm:$0xff]
    %v93 = vld [vmem:[#allocation4 + $0x138] sm:$0xff]
    %v94 = vld [vmem:[#allocation4 + $0x140] sm:$0xff]
    %v95 = vld [vmem:[#allocation4 + $0x148] sm:$0xff]
    %v96 = vld [vmem:[#allocation4 + $0x150] sm:$0xff]
    %v97 = vld [vmem:[#allocation4 + $0x158] sm:$0xff]
    %v98 = vld [vmem:[#allocation4 + $0x160] sm:$0xff]
    %v99 = vld [vmem:[#allocation4 + $0x168] sm:$0xff]
    %v100 = vld [vmem:[#allocation4 + $0x170] sm:$0xff]
    %v101 = vld [vmem:[#allocation4 + $0x178] sm:$0xff]
    %v102 = vld [vmem:[#allocation4 + $0x180] sm:$0xff]
    %v103 = vld [vmem:[#allocation4 + $0x188] sm:$0xff]
    %v104 = vld [vmem:[#allocation4 + $0x190] sm:$0xff]
    %v105 = vld [vmem:[#allocation4 + $0x198] sm:$0xff]
    %v106 = vld [vmem:[#allocation4 + $0x1a0] sm:$0xff]
    %v107 = vld [vmem:[#allocation4 + $0x1a8] sm:$0xff]
    %v108 = vld [vmem:[#allocation4 + $0x1b0] sm:$0xff]
    %v109 = vld [vmem:[#allocation4 + $0x1b8] sm:$0xff]
    %v110 = vld [vmem:[#allocation4 + $0x1c0] sm:$0xff]
    %v111 = vld [vmem:[#allocation4 + $0x1c8] sm:$0xff]
    %v112 = vld [vmem:[#allocation4 + $0x1d0] sm:$0xff]
    %v113 = vld [vmem:[#allocation4 + $0x1d8] sm:$0xff]
    %v114 = vld [vmem:[#allocation4 + $0x1e0] sm:$0xff]
    %v115 = vld [vmem:[#allocation4 + $0x1e8] sm:$0xff]
    %v116 = vld [vmem:[#allocation4 + $0x1f0] sm:$0xff]
    %v117 = vld [vmem:[#allocation4 + $0x1f8] sm:$0xff]
    %v118 = vld [vmem:[#allocation6] sm:$0xff]
    %v119 = vld [vmem:[#allocation6 + $0x8] sm:$0xff]
    %v120 = vld [vmem:[#allocation6 + $0x10] sm:$0xff]
    %v121 = vld [vmem:[#allocation6 + $0x18] sm:$0xff]
    %v126 = vlaneseq
    %v127 = vshrl.u32 %v126, 7
    %v128 = vsub.s32 0, %v127
    %v129 = vrot.slane %v118, %v128
    %v130 = vlaneseq
    %v131 = vshrl.u32 %v130, 7
    %v132 = vsub.s32 1, %v131
    %v133 = vrot.slane %v118, %v132
    %v134 = vlaneseq
    %v135 = vshrl.u32 %v134, 7
    %v136 = vsub.s32 2, %v135
    %v137 = vrot.slane %v118, %v136
    %v138 = vlaneseq
    %v139 = vshrl.u32 %v138, 7
    %v140 = vsub.s32 3, %v139
    %v141 = vrot.slane %v118, %v140
    %v142 = vlaneseq
    %v143 = vshrl.u32 %v142, 7
    %v144 = vsub.s32 4, %v143
    %v145 = vrot.slane %v118, %v144
    %v146 = vlaneseq
    %v147 = vshrl.u32 %v146, 7
    %v148 = vsub.s32 5, %v147
    %v149 = vrot.slane %v118, %v148
    %v150 = vlaneseq
    %v151 = vshrl.u32 %v150, 7
    %v152 = vsub.s32 6, %v151
    %v153 = vrot.slane %v118, %v152
    %v154 = vlaneseq
    %v155 = vshrl.u32 %v154, 7
    %v156 = vsub.s32 7, %v155
    %v157 = vrot.slane %v118, %v156
    %v158 = vlaneseq
    %v159 = vshrl.u32 %v158, 7
    %v160 = vsub.s32 0, %v159
    %v161 = vrot.slane %v119, %v160
    %v162 = vlaneseq
    %v163 = vshrl.u32 %v162, 7
    %v164 = vsub.s32 1, %v163
    %v165 = vrot.slane %v119, %v164
    %v166 = vlaneseq
    %v167 = vshrl.u32 %v166, 7
    %v168 = vsub.s32 2, %v167
    %v169 = vrot.slane %v119, %v168
    %v170 = vlaneseq
    %v171 = vshrl.u32 %v170, 7
    %v172 = vsub.s32 3, %v171
    %v173 = vrot.slane %v119, %v172
    %v174 = vlaneseq
    %v175 = vshrl.u32 %v174, 7
    %v176 = vsub.s32 4, %v175
    %v177 = vrot.slane %v119, %v176
    %v178 = vlaneseq
    %v179 = vshrl.u32 %v178, 7
    %v180 = vsub.s32 5, %v179
    %v181 = vrot.slane %v119, %v180
    %v182 = vlaneseq
    %v183 = vshrl.u32 %v182, 7
    %v184 = vsub.s32 6, %v183
    %v185 = vrot.slane %v119, %v184
    %v186 = vlaneseq
    %v187 = vshrl.u32 %v186, 7
    %v188 = vsub.s32 7, %v187
    %v189 = vrot.slane %v119, %v188
    %v190 = vlaneseq
    %v191 = vshrl.u32 %v190, 7
    %v192 = vsub.s32 0, %v191
    %v193 = vrot.slane %v120, %v192
    %v194 = vlaneseq
    %v195 = vshrl.u32 %v194, 7
    %v196 = vsub.s32 1, %v195
    %v197 = vrot.slane %v120, %v196
    %v198 = vlaneseq
    %v199 = vshrl.u32 %v198, 7
    %v200 = vsub.s32 2, %v199
    %v201 = vrot.slane %v120, %v200
    %v202 = vlaneseq
    %v203 = vshrl.u32 %v202, 7
    %v204 = vsub.s32 3, %v203
    %v205 = vrot.slane %v120, %v204
    %v206 = vlaneseq
    %v207 = vshrl.u32 %v206, 7
    %v208 = vsub.s32 4, %v207
    %v209 = vrot.slane %v120, %v208
    %v210 = vlaneseq
    %v211 = vshrl.u32 %v210, 7
    %v212 = vsub.s32 5, %v211
    %v213 = vrot.slane %v120, %v212
    %v214 = vlaneseq
    %v215 = vshrl.u32 %v214, 7
    %v216 = vsub.s32 6, %v215
    %v217 = vrot.slane %v120, %v216
    %v218 = vlaneseq
    %v219 = vshrl.u32 %v218, 7
    %v220 = vsub.s32 7, %v219
    %v221 = vrot.slane %v120, %v220
    %v222 = vlaneseq
    %v223 = vshrl.u32 %v222, 7
    %v224 = vsub.s32 0, %v223
    %v225 = vrot.slane %v121, %v224
    %v226 = vlaneseq
    %v227 = vshrl.u32 %v226, 7
    %v228 = vsub.s32 1, %v227
    %v229 = vrot.slane %v121, %v228
    %v230 = vlaneseq
    %v231 = vshrl.u32 %v230, 7
    %v232 = vsub.s32 2, %v231
    %v233 = vrot.slane %v121, %v232
    %v234 = vlaneseq
    %v235 = vshrl.u32 %v234, 7
    %v236 = vsub.s32 3, %v235
    %v237 = vrot.slane %v121, %v236
    %v238 = vlaneseq
    %v239 = vshrl.u32 %v238, 7
    %v240 = vsub.s32 4, %v239
    %v241 = vrot.slane %v121, %v240
    %v242 = vlaneseq
    %v243 = vshrl.u32 %v242, 7
    %v244 = vsub.s32 5, %v243
    %v245 = vrot.slane %v121, %v244
    %v246 = vlaneseq
    %v247 = vshrl.u32 %v246, 7
    %v248 = vsub.s32 6, %v247
    %v249 = vrot.slane %v121, %v248
    %v250 = vlaneseq
    %v251 = vshrl.u32 %v250, 7
    %v252 = vsub.s32 7, %v251
    %v253 = vrot.slane %v121, %v252
    %v350 = vunpack.c.l.b16 %v54
    %v351 = vunpack.c.h.b16 %v54
    %v352 = vunpack.c.l.b16 %v55
    %v353 = vunpack.c.h.b16 %v55
    %v354 = vunpack.c.l.b16 %v56
    %v355 = vunpack.c.h.b16 %v56
    %v356 = vunpack.c.l.b16 %v57
    %v357 = vunpack.c.h.b16 %v57
    %v358 = vunpack.c.l.b16 %v58
    %v359 = vunpack.c.h.b16 %v58
    %v360 = vunpack.c.l.b16 %v59
    %v361 = vunpack.c.h.b16 %v59
    %v362 = vunpack.c.l.b16 %v60
    %v363 = vunpack.c.h.b16 %v60
    %v364 = vunpack.c.l.b16 %v61
    %v365 = vunpack.c.h.b16 %v61
    %v366 = vunpack.c.l.b16 %v62
    %v367 = vunpack.c.h.b16 %v62
    %v368 = vunpack.c.l.b16 %v63
    %v369 = vunpack.c.h.b16 %v63
    %v370 = vunpack.c.l.b16 %v64
    %v371 = vunpack.c.h.b16 %v64
    %v372 = vunpack.c.l.b16 %v65
    %v373 = vunpack.c.h.b16 %v65
    %v374 = vunpack.c.l.b16 %v66
    %v375 = vunpack.c.h.b16 %v66
    %v376 = vunpack.c.l.b16 %v67
    %v377 = vunpack.c.h.b16 %v67
    %v378 = vunpack.c.l.b16 %v68
    %v379 = vunpack.c.h.b16 %v68
    %v380 = vunpack.c.l.b16 %v69
    %v381 = vunpack.c.h.b16 %v69
    %v382 = vunpack.c.l.b16 %v70
    %v383 = vunpack.c.h.b16 %v70
    %v384 = vunpack.c.l.b16 %v71
    %v385 = vunpack.c.h.b16 %v71
    %v386 = vunpack.c.l.b16 %v72
    %v387 = vunpack.c.h.b16 %v72
    %v388 = vunpack.c.l.b16 %v73
    %v389 = vunpack.c.h.b16 %v73
    %v390 = vunpack.c.l.b16 %v74
    %v391 = vunpack.c.h.b16 %v74
    %v392 = vunpack.c.l.b16 %v75
    %v393 = vunpack.c.h.b16 %v75
    %v394 = vunpack.c.l.b16 %v76
    %v395 = vunpack.c.h.b16 %v76
    %v396 = vunpack.c.l.b16 %v77
    %v397 = vunpack.c.h.b16 %v77
    %v398 = vunpack.c.l.b16 %v78
    %v399 = vunpack.c.h.b16 %v78
    %v400 = vunpack.c.l.b16 %v79
    %v401 = vunpack.c.h.b16 %v79
    %v402 = vunpack.c.l.b16 %v80
    %v403 = vunpack.c.h.b16 %v80
    %v404 = vunpack.c.l.b16 %v81
    %v405 = vunpack.c.h.b16 %v81
    %v406 = vunpack.c.l.b16 %v82
    %v407 = vunpack.c.h.b16 %v82
    %v408 = vunpack.c.l.b16 %v83
    %v409 = vunpack.c.h.b16 %v83
    %v410 = vunpack.c.l.b16 %v84
    %v411 = vunpack.c.h.b16 %v84
    %v412 = vunpack.c.l.b16 %v85
    %v413 = vunpack.c.h.b16 %v85
    %v414 = vunpack.c.l.b16 %v86
    %v415 = vunpack.c.h.b16 %v86
    %v416 = vunpack.c.l.b16 %v87
    %v417 = vunpack.c.h.b16 %v87
    %v418 = vunpack.c.l.b16 %v88
    %v419 = vunpack.c.h.b16 %v88
    %v420 = vunpack.c.l.b16 %v89
    %v421 = vunpack.c.h.b16 %v89
    %v422 = vunpack.c.l.b16 %v90
    %v423 = vunpack.c.h.b16 %v90
    %v424 = vunpack.c.l.b16 %v91
    %v425 = vunpack.c.h.b16 %v91
    %v426 = vunpack.c.l.b16 %v92
    %v427 = vunpack.c.h.b16 %v92
    %v428 = vunpack.c.l.b16 %v93
    %v429 = vunpack.c.h.b16 %v93
    %v430 = vunpack.c.l.b16 %v94
    %v431 = vunpack.c.h.b16 %v94
    %v432 = vunpack.c.l.b16 %v95
    %v433 = vunpack.c.h.b16 %v95
    %v434 = vunpack.c.l.b16 %v96
    %v435 = vunpack.c.h.b16 %v96
    %v436 = vunpack.c.l.b16 %v97
    %v437 = vunpack.c.h.b16 %v97
    %v438 = vunpack.c.l.b16 %v98
    %v439 = vunpack.c.h.b16 %v98
    %v440 = vunpack.c.l.b16 %v99
    %v441 = vunpack.c.h.b16 %v99
    %v442 = vunpack.c.l.b16 %v100
    %v443 = vunpack.c.h.b16 %v100
    %v444 = vunpack.c.l.b16 %v101
    %v445 = vunpack.c.h.b16 %v101
    %v446 = vunpack.c.l.b16 %v102
    %v447 = vunpack.c.h.b16 %v102
    %v448 = vunpack.c.l.b16 %v103
    %v449 = vunpack.c.h.b16 %v103
    %v450 = vunpack.c.l.b16 %v104
    %v451 = vunpack.c.h.b16 %v104
    %v452 = vunpack.c.l.b16 %v105
    %v453 = vunpack.c.h.b16 %v105
    %v454 = vunpack.c.l.b16 %v106
    %v455 = vunpack.c.h.b16 %v106
    %v456 = vunpack.c.l.b16 %v107
    %v457 = vunpack.c.h.b16 %v107
    %v458 = vunpack.c.l.b16 %v108
    %v459 = vunpack.c.h.b16 %v108
    %v460 = vunpack.c.l.b16 %v109
    %v461 = vunpack.c.h.b16 %v109
    %v462 = vunpack.c.l.b16 %v110
    %v463 = vunpack.c.h.b16 %v110
    %v464 = vunpack.c.l.b16 %v111
    %v465 = vunpack.c.h.b16 %v111
    %v466 = vunpack.c.l.b16 %v112
    %v467 = vunpack.c.h.b16 %v112
    %v468 = vunpack.c.l.b16 %v113
    %v469 = vunpack.c.h.b16 %v113
    %v470 = vunpack.c.l.b16 %v114
    %v471 = vunpack.c.h.b16 %v114
    %v472 = vunpack.c.l.b16 %v115
    %v473 = vunpack.c.h.b16 %v115
    %v474 = vunpack.c.l.b16 %v116
    %v475 = vunpack.c.h.b16 %v116
    %v476 = vunpack.c.l.b16 %v117
    %v477 = vunpack.c.h.b16 %v117
    %v478 = vpack.c.b16 %v382, %v350
    %v479 = vpack.c.b16 %v383, %v351
    %v480 = vpack.c.b16 %v384, %v352
    %v481 = vpack.c.b16 %v385, %v353
    %v482 = vpack.c.b16 %v386, %v354
    %v483 = vpack.c.b16 %v387, %v355
    %v484 = vpack.c.b16 %v388, %v356
    %v485 = vpack.c.b16 %v389, %v357
    %v486 = vpack.c.b16 %v390, %v358
    %v487 = vpack.c.b16 %v391, %v359
    %v488 = vpack.c.b16 %v392, %v360
    %v489 = vpack.c.b16 %v393, %v361
    %v490 = vpack.c.b16 %v394, %v362
    %v491 = vpack.c.b16 %v395, %v363
    %v492 = vpack.c.b16 %v396, %v364
    %v493 = vpack.c.b16 %v397, %v365
    %v494 = vpack.c.b16 %v398, %v366
    %v495 = vpack.c.b16 %v399, %v367
    %v496 = vpack.c.b16 %v400, %v368
    %v497 = vpack.c.b16 %v401, %v369
    %v498 = vpack.c.b16 %v402, %v370
    %v499 = vpack.c.b16 %v403, %v371
    %v500 = vpack.c.b16 %v404, %v372
    %v501 = vpack.c.b16 %v405, %v373
    %v502 = vpack.c.b16 %v406, %v374
    %v503 = vpack.c.b16 %v407, %v375
    %v504 = vpack.c.b16 %v408, %v376
    %v505 = vpack.c.b16 %v409, %v377
    %v506 = vpack.c.b16 %v410, %v378
    %v507 = vpack.c.b16 %v411, %v379
    %v508 = vpack.c.b16 %v412, %v380
    %v509 = vpack.c.b16 %v413, %v381
    %v510 = vpack.c.b16 %v446, %v414
    %v511 = vpack.c.b16 %v447, %v415
    %v512 = vpack.c.b16 %v448, %v416
    %v513 = vpack.c.b16 %v449, %v417
    %v514 = vpack.c.b16 %v450, %v418
    %v515 = vpack.c.b16 %v451, %v419
    %v516 = vpack.c.b16 %v452, %v420
    %v517 = vpack.c.b16 %v453, %v421
    %v518 = vpack.c.b16 %v454, %v422
    %v519 = vpack.c.b16 %v455, %v423
    %v520 = vpack.c.b16 %v456, %v424
    %v521 = vpack.c.b16 %v457, %v425
    %v522 = vpack.c.b16 %v458, %v426
    %v523 = vpack.c.b16 %v459, %v427
    %v524 = vpack.c.b16 %v460, %v428
    %v525 = vpack.c.b16 %v461, %v429
    %v526 = vpack.c.b16 %v462, %v430
    %v527 = vpack.c.b16 %v463, %v431
    %v528 = vpack.c.b16 %v464, %v432
    %v529 = vpack.c.b16 %v465, %v433
    %v530 = vpack.c.b16 %v466, %v434
    %v531 = vpack.c.b16 %v467, %v435
    %v532 = vpack.c.b16 %v468, %v436
    %v533 = vpack.c.b16 %v469, %v437
    %v534 = vpack.c.b16 %v470, %v438
    %v535 = vpack.c.b16 %v471, %v439
    %v536 = vpack.c.b16 %v472, %v440
    %v537 = vpack.c.b16 %v473, %v441
    %v538 = vpack.c.b16 %v474, %v442
    %v539 = vpack.c.b16 %v475, %v443
    %v540 = vpack.c.b16 %v476, %v444
    %v541 = vpack.c.b16 %v477, %v445
    %vm606 = vcmask 261120
    %v608 = vsel %vm606, %v53, 0
    %610 = vmatprep.subr.bf16.mxu0 %v479
    %611 = vmatpush1.bf16.msra.mxu0 %v478
    %612 = vmatprep.subr.bf16.mxu0 %v511
    %613 = vmatpush1.bf16.msra.mxu0 %v510
    %614 = vmatprep.subr.bf16.mxu0 0
    %615 = vmatpush1.bf16.msra.mxu0 0
    %616 = vmatprep.subr.bf16.mxu0 0
    %617 = vmatpush1.bf16.msra.mxu0 0
    %618 = vmatprep.subr.bf16.mxu0 0
    %619 = vmatpush1.bf16.msra.mxu0 0
    %620 = vmatprep.subr.bf16.mxu0 0
    %621 = vmatpush1.bf16.msra.mxu0 0
    %622 = vmatprep.subr.bf16.mxu0 0
    %623 = vmatpush1.bf16.msra.mxu0 0
    %624 = vmatprep.subr.bf16.mxu0 0
    %625 = vmatpush1.bf16.msra.mxu0 0
    %626 = vmatprep.subr.bf16.mxu0 0
    %627 = vmatpush1.bf16.msra.mxu0 0
    %628 = vmatprep.subr.bf16.mxu0 0
    %629 = vmatpush1.bf16.msra.mxu0 0
    %630 = vmatprep.subr.bf16.mxu0 0
    %631 = vmatpush1.bf16.msra.mxu0 0
    %632 = vmatprep.subr.bf16.mxu0 0
    %633 = vmatpush1.bf16.msra.mxu0 0
    %634 = vmatprep.subr.bf16.mxu0 0
    %635 = vmatpush1.bf16.msra.mxu0 0
    %636 = vmatprep.subr.bf16.mxu0 0
    %637 = vmatpush1.bf16.msra.mxu0 0
    %638 = vmatprep.subr.bf16.mxu0 0
    %639 = vmatpush1.bf16.msra.mxu0 0
    %640 = vmatprep.subr.bf16.mxu0 0
    %641 = vmatpush1.bf16.msra.mxu0 0
    %642 = vmatprep.mubr.bf16.mxu0 0
    %643 = vmatmul.mubr.bf16.gmra.mrb[0].mxu0 %v608
    %v644 = vpop.f32.mrb[0].mxu0
    %v645 = vadd.f32 %v129, %v644
    %v646 = vpop.f32.mrb[0].mxu0
    %v647 = vadd.f32 %v133, %v646
    %v648 = vpop.f32.mrb[0].mxu0
    %v649 = vpop.f32.mrb[0].mxu0
    %650 = vdwg.mxu0
    %651 = vmatprep.subr.bf16.mxu0 %v481
    %652 = vmatpush1.bf16.msra.mxu0 %v480
    %653 = vmatprep.subr.bf16.mxu0 %v513
    %654 = vmatpush1.bf16.msra.mxu0 %v512
    %655 = vmatprep.subr.bf16.mxu0 0
    %656 = vmatpush1.bf16.msra.mxu0 0
    %657 = vmatprep.subr.bf16.mxu0 0
    %658 = vmatpush1.bf16.msra.mxu0 0
    %659 = vmatprep.subr.bf16.mxu0 0
    %660 = vmatpush1.bf16.msra.mxu0 0
    %661 = vmatprep.subr.bf16.mxu0 0
    %662 = vmatpush1.bf16.msra.mxu0 0
    %663 = vmatprep.subr.bf16.mxu0 0
    %664 = vmatpush1.bf16.msra.mxu0 0
    %665 = vmatprep.subr.bf16.mxu0 0
    %666 = vmatpush1.bf16.msra.mxu0 0
    %667 = vmatprep.subr.bf16.mxu0 0
    %668 = vmatpush1.bf16.msra.mxu0 0
    %669 = vmatprep.subr.bf16.mxu0 0
    %670 = vmatpush1.bf16.msra.mxu0 0
    %671 = vmatprep.subr.bf16.mxu0 0
    %672 = vmatpush1.bf16.msra.mxu0 0
    %673 = vmatprep.subr.bf16.mxu0 0
    %674 = vmatpush1.bf16.msra.mxu0 0
    %675 = vmatprep.subr.bf16.mxu0 0
    %676 = vmatpush1.bf16.msra.mxu0 0
    %677 = vmatprep.subr.bf16.mxu0 0
    %678 = vmatpush1.bf16.msra.mxu0 0
    %679 = vmatprep.subr.bf16.mxu0 0
    %680 = vmatpush1.bf16.msra.mxu0 0
    %681 = vmatprep.subr.bf16.mxu0 0
    %682 = vmatpush1.bf16.msra.mxu0 0
    %683 = vmatprep.mubr.bf16.mxu0 0
    %684 = vmatmul.mubr.bf16.gmra.mrb[0].mxu0 %v608
    %v685 = vpop.f32.mrb[0].mxu0
    %v686 = vadd.f32 %v137, %v685
    %v687 = vpop.f32.mrb[0].mxu0
    %v688 = vadd.f32 %v141, %v687
    %v689 = vpop.f32.mrb[0].mxu0
    %v690 = vpop.f32.mrb[0].mxu0
    %691 = vdwg.mxu0
    %692 = vmatprep.subr.bf16.mxu0 %v483
    %693 = vmatpush1.bf16.msra.mxu0 %v482
    %694 = vmatprep.subr.bf16.mxu0 %v515
    %695 = vmatpush1.bf16.msra.mxu0 %v514
    %696 = vmatprep.subr.bf16.mxu0 0
    %697 = vmatpush1.bf16.msra.mxu0 0
    %698 = vmatprep.subr.bf16.mxu0 0
    %699 = vmatpush1.bf16.msra.mxu0 0
    %700 = vmatprep.subr.bf16.mxu0 0
    %701 = vmatpush1.bf16.msra.mxu0 0
    %702 = vmatprep.subr.bf16.mxu0 0
    %703 = vmatpush1.bf16.msra.mxu0 0
    %704 = vmatprep.subr.bf16.mxu0 0
    %705 = vmatpush1.bf16.msra.mxu0 0
    %706 = vmatprep.subr.bf16.mxu0 0
    %707 = vmatpush1.bf16.msra.mxu0 0
    %708 = vmatprep.subr.bf16.mxu0 0
    %709 = vmatpush1.bf16.msra.mxu0 0
    %710 = vmatprep.subr.bf16.mxu0 0
    %711 = vmatpush1.bf16.msra.mxu0 0
    %712 = vmatprep.subr.bf16.mxu0 0
    %713 = vmatpush1.bf16.msra.mxu0 0
    %714 = vmatprep.subr.bf16.mxu0 0
    %715 = vmatpush1.bf16.msra.mxu0 0
    %716 = vmatprep.subr.bf16.mxu0 0
    %717 = vmatpush1.bf16.msra.mxu0 0
    %718 = vmatprep.subr.bf16.mxu0 0
    %719 = vmatpush1.bf16.msra.mxu0 0
    %720 = vmatprep.subr.bf16.mxu0 0
    %721 = vmatpush1.bf16.msra.mxu0 0
    %722 = vmatprep.subr.bf16.mxu0 0
    %723 = vmatpush1.bf16.msra.mxu0 0
    %724 = vmatprep.mubr.bf16.mxu0 0
    %725 = vmatmul.mubr.bf16.gmra.mrb[0].mxu0 %v608
    %v726 = vpop.f32.mrb[0].mxu0
    %v727 = vadd.f32 %v145, %v726
    %v728 = vpop.f32.mrb[0].mxu0
    %v729 = vadd.f32 %v149, %v728
    %v730 = vpop.f32.mrb[0].mxu0
    %v731 = vpop.f32.mrb[0].mxu0
    %732 = vdwg.mxu0
    %733 = vmatprep.subr.bf16.mxu0 %v485
    %734 = vmatpush1.bf16.msra.mxu0 %v484
    %735 = vmatprep.subr.bf16.mxu0 %v517
    %736 = vmatpush1.bf16.msra.mxu0 %v516
    %737 = vmatprep.subr.bf16.mxu0 0
    %738 = vmatpush1.bf16.msra.mxu0 0
    %739 = vmatprep.subr.bf16.mxu0 0
    %740 = vmatpush1.bf16.msra.mxu0 0
    %741 = vmatprep.subr.bf16.mxu0 0
    %742 = vmatpush1.bf16.msra.mxu0 0
    %743 = vmatprep.subr.bf16.mxu0 0
    %744 = vmatpush1.bf16.msra.mxu0 0
    %745 = vmatprep.subr.bf16.mxu0 0
    %746 = vmatpush1.bf16.msra.mxu0 0
    %747 = vmatprep.subr.bf16.mxu0 0
    %748 = vmatpush1.bf16.msra.mxu0 0
    %749 = vmatprep.subr.bf16.mxu0 0
    %750 = vmatpush1.bf16.msra.mxu0 0
    %751 = vmatprep.subr.bf16.mxu0 0
    %752 = vmatpush1.bf16.msra.mxu0 0
    %753 = vmatprep.subr.bf16.mxu0 0
    %754 = vmatpush1.bf16.msra.mxu0 0
    %755 = vmatprep.subr.bf16.mxu0 0
    %756 = vmatpush1.bf16.msra.mxu0 0
    %757 = vmatprep.subr.bf16.mxu0 0
    %758 = vmatpush1.bf16.msra.mxu0 0
    %759 = vmatprep.subr.bf16.mxu0 0
    %760 = vmatpush1.bf16.msra.mxu0 0
    %761 = vmatprep.subr.bf16.mxu0 0
    %762 = vmatpush1.bf16.msra.mxu0 0
    %763 = vmatprep.subr.bf16.mxu0 0
    %764 = vmatpush1.bf16.msra.mxu0 0
    %765 = vmatprep.mubr.bf16.mxu0 0
    %766 = vmatmul.mubr.bf16.gmra.mrb[0].mxu0 %v608
    %v767 = vpop.f32.mrb[0].mxu0
    %v768 = vadd.f32 %v153, %v767
    %v769 = vpop.f32.mrb[0].mxu0
    %v770 = vadd.f32 %v157, %v769
    %v771 = vpop.f32.mrb[0].mxu0
    %v772 = vpop.f32.mrb[0].mxu0
    %773 = vdwg.mxu0
    %774 = vmatprep.subr.bf16.mxu0 %v487
    %775 = vmatpush1.bf16.msra.mxu0 %v486
    %776 = vmatprep.subr.bf16.mxu0 %v519
    %777 = vmatpush1.bf16.msra.mxu0 %v518
    %778 = vmatprep.subr.bf16.mxu0 0
    %779 = vmatpush1.bf16.msra.mxu0 0
    %780 = vmatprep.subr.bf16.mxu0 0
    %781 = vmatpush1.bf16.msra.mxu0 0
    %782 = vmatprep.subr.bf16.mxu0 0
    %783 = vmatpush1.bf16.msra.mxu0 0
    %784 = vmatprep.subr.bf16.mxu0 0
    %785 = vmatpush1.bf16.msra.mxu0 0
    %786 = vmatprep.subr.bf16.mxu0 0
    %787 = vmatpush1.bf16.msra.mxu0 0
    %788 = vmatprep.subr.bf16.mxu0 0
    %789 = vmatpush1.bf16.msra.mxu0 0
    %790 = vmatprep.subr.bf16.mxu0 0
    %791 = vmatpush1.bf16.msra.mxu0 0
    %792 = vmatprep.subr.bf16.mxu0 0
    %793 = vmatpush1.bf16.msra.mxu0 0
    %794 = vmatprep.subr.bf16.mxu0 0
    %795 = vmatpush1.bf16.msra.mxu0 0
    %796 = vmatprep.subr.bf16.mxu0 0
    %797 = vmatpush1.bf16.msra.mxu0 0
    %798 = vmatprep.subr.bf16.mxu0 0
    %799 = vmatpush1.bf16.msra.mxu0 0
    %800 = vmatprep.subr.bf16.mxu0 0
    %801 = vmatpush1.bf16.msra.mxu0 0
    %802 = vmatprep.subr.bf16.mxu0 0
    %803 = vmatpush1.bf16.msra.mxu0 0
    %804 = vmatprep.subr.bf16.mxu0 0
    %805 = vmatpush1.bf16.msra.mxu0 0
    %806 = vmatprep.mubr.bf16.mxu0 0
    %807 = vmatmul.mubr.bf16.gmra.mrb[0].mxu0 %v608
    %v808 = vpop.f32.mrb[0].mxu0
    %v809 = vadd.f32 %v161, %v808
    %v810 = vpop.f32.mrb[0].mxu0
    %v811 = vadd.f32 %v165, %v810
    %v812 = vpop.f32.mrb[0].mxu0
    %v813 = vpop.f32.mrb[0].mxu0
    %814 = vdwg.mxu0
    %815 = vmatprep.subr.bf16.mxu0 %v489
    %816 = vmatpush1.bf16.msra.mxu0 %v488
    %817 = vmatprep.subr.bf16.mxu0 %v521
    %818 = vmatpush1.bf16.msra.mxu0 %v520
    %819 = vmatprep.subr.bf16.mxu0 0
    %820 = vmatpush1.bf16.msra.mxu0 0
    %821 = vmatprep.subr.bf16.mxu0 0
    %822 = vmatpush1.bf16.msra.mxu0 0
    %823 = vmatprep.subr.bf16.mxu0 0
    %824 = vmatpush1.bf16.msra.mxu0 0
    %825 = vmatprep.subr.bf16.mxu0 0
    %826 = vmatpush1.bf16.msra.mxu0 0
    %827 = vmatprep.subr.bf16.mxu0 0
    %828 = vmatpush1.bf16.msra.mxu0 0
    %829 = vmatprep.subr.bf16.mxu0 0
    %830 = vmatpush1.bf16.msra.mxu0 0
    %831 = vmatprep.subr.bf16.mxu0 0
    %832 = vmatpush1.bf16.msra.mxu0 0
    %833 = vmatprep.subr.bf16.mxu0 0
    %834 = vmatpush1.bf16.msra.mxu0 0
    %835 = vmatprep.subr.bf16.mxu0 0
    %836 = vmatpush1.bf16.msra.mxu0 0
    %837 = vmatprep.subr.bf16.mxu0 0
    %838 = vmatpush1.bf16.msra.mxu0 0
    %839 = vmatprep.subr.bf16.mxu0 0
    %840 = vmatpush1.bf16.msra.mxu0 0
    %841 = vmatprep.subr.bf16.mxu0 0
    %842 = vmatpush1.bf16.msra.mxu0 0
    %843 = vmatprep.subr.bf16.mxu0 0
    %844 = vmatpush1.bf16.msra.mxu0 0
    %845 = vmatprep.subr.bf16.mxu0 0
    %846 = vmatpush1.bf16.msra.mxu0 0
    %847 = vmatprep.mubr.bf16.mxu0 0
    %848 = vmatmul.mubr.bf16.gmra.mrb[0].mxu0 %v608
    %v849 = vpop.f32.mrb[0].mxu0
    %v850 = vadd.f32 %v169, %v849
    %v851 = vpop.f32.mrb[0].mxu0
    %v852 = vadd.f32 %v173, %v851
    %v853 = vpop.f32.mrb[0].mxu0
    %v854 = vpop.f32.mrb[0].mxu0
    %855 = vdwg.mxu0
    %856 = vmatprep.subr.bf16.mxu0 %v491
    %857 = vmatpush1.bf16.msra.mxu0 %v490
    %858 = vmatprep.subr.bf16.mxu0 %v523
    %859 = vmatpush1.bf16.msra.mxu0 %v522
    %860 = vmatprep.subr.bf16.mxu0 0
    %861 = vmatpush1.bf16.msra.mxu0 0
    %862 = vmatprep.subr.bf16.mxu0 0
    %863 = vmatpush1.bf16.msra.mxu0 0
    %864 = vmatprep.subr.bf16.mxu0 0
    %865 = vmatpush1.bf16.msra.mxu0 0
    %866 = vmatprep.subr.bf16.mxu0 0
    %867 = vmatpush1.bf16.msra.mxu0 0
    %868 = vmatprep.subr.bf16.mxu0 0
    %869 = vmatpush1.bf16.msra.mxu0 0
    %870 = vmatprep.subr.bf16.mxu0 0
    %871 = vmatpush1.bf16.msra.mxu0 0
    %872 = vmatprep.subr.bf16.mxu0 0
    %873 = vmatpush1.bf16.msra.mxu0 0
    %874 = vmatprep.subr.bf16.mxu0 0
    %875 = vmatpush1.bf16.msra.mxu0 0
    %876 = vmatprep.subr.bf16.mxu0 0
    %877 = vmatpush1.bf16.msra.mxu0 0
    %878 = vmatprep.subr.bf16.mxu0 0
    %879 = vmatpush1.bf16.msra.mxu0 0
    %880 = vmatprep.subr.bf16.mxu0 0
    %881 = vmatpush1.bf16.msra.mxu0 0
    %882 = vmatprep.subr.bf16.mxu0 0
    %883 = vmatpush1.bf16.msra.mxu0 0
    %884 = vmatprep.subr.bf16.mxu0 0
    %885 = vmatpush1.bf16.msra.mxu0 0
    %886 = vmatprep.subr.bf16.mxu0 0
    %887 = vmatpush1.bf16.msra.mxu0 0
    %888 = vmatprep.mubr.bf16.mxu0 0
    %889 = vmatmul.mubr.bf16.gmra.mrb[0].mxu0 %v608
    %v890 = vpop.f32.mrb[0].mxu0
    %v891 = vadd.f32 %v177, %v890
    %v892 = vpop.f32.mrb[0].mxu0
    %v893 = vadd.f32 %v181, %v892
    %v894 = vpop.f32.mrb[0].mxu0
    %v895 = vpop.f32.mrb[0].mxu0
    %896 = vdwg.mxu0
    %897 = vmatprep.subr.bf16.mxu0 %v493
    %898 = vmatpush1.bf16.msra.mxu0 %v492
    %899 = vmatprep.subr.bf16.mxu0 %v525
    %900 = vmatpush1.bf16.msra.mxu0 %v524
    %901 = vmatprep.subr.bf16.mxu0 0
    %902 = vmatpush1.bf16.msra.mxu0 0
    %903 = vmatprep.subr.bf16.mxu0 0
    %904 = vmatpush1.bf16.msra.mxu0 0
    %905 = vmatprep.subr.bf16.mxu0 0
    %906 = vmatpush1.bf16.msra.mxu0 0
    %907 = vmatprep.subr.bf16.mxu0 0
    %908 = vmatpush1.bf16.msra.mxu0 0
    %909 = vmatprep.subr.bf16.mxu0 0
    %910 = vmatpush1.bf16.msra.mxu0 0
    %911 = vmatprep.subr.bf16.mxu0 0
    %912 = vmatpush1.bf16.msra.mxu0 0
    %913 = vmatprep.subr.bf16.mxu0 0
    %914 = vmatpush1.bf16.msra.mxu0 0
    %915 = vmatprep.subr.bf16.mxu0 0
    %916 = vmatpush1.bf16.msra.mxu0 0
    %917 = vmatprep.subr.bf16.mxu0 0
    %918 = vmatpush1.bf16.msra.mxu0 0
    %919 = vmatprep.subr.bf16.mxu0 0
    %920 = vmatpush1.bf16.msra.mxu0 0
    %921 = vmatprep.subr.bf16.mxu0 0
    %922 = vmatpush1.bf16.msra.mxu0 0
    %923 = vmatprep.subr.bf16.mxu0 0
    %924 = vmatpush1.bf16.msra.mxu0 0
    %925 = vmatprep.subr.bf16.mxu0 0
    %926 = vmatpush1.bf16.msra.mxu0 0
    %927 = vmatprep.subr.bf16.mxu0 0
    %928 = vmatpush1.bf16.msra.mxu0 0
    %929 = vmatprep.mubr.bf16.mxu0 0
    %930 = vmatmul.mubr.bf16.gmra.mrb[0].mxu0 %v608
    %v931 = vpop.f32.mrb[0].mxu0
    %v932 = vadd.f32 %v185, %v931
    %v933 = vpop.f32.mrb[0].mxu0
    %v934 = vadd.f32 %v189, %v933
    %v935 = vpop.f32.mrb[0].mxu0
    %v936 = vpop.f32.mrb[0].mxu0
    %937 = vdwg.mxu0
    %938 = vmatprep.subr.bf16.mxu0 %v495
    %939 = vmatpush1.bf16.msra.mxu0 %v494
    %940 = vmatprep.subr.bf16.mxu0 %v527
    %941 = vmatpush1.bf16.msra.mxu0 %v526
    %942 = vmatprep.subr.bf16.mxu0 0
    %943 = vmatpush1.bf16.msra.mxu0 0
    %944 = vmatprep.subr.bf16.mxu0 0
    %945 = vmatpush1.bf16.msra.mxu0 0
    %946 = vmatprep.subr.bf16.mxu0 0
    %947 = vmatpush1.bf16.msra.mxu0 0
    %948 = vmatprep.subr.bf16.mxu0 0
    %949 = vmatpush1.bf16.msra.mxu0 0
    %950 = vmatprep.subr.bf16.mxu0 0
    %951 = vmatpush1.bf16.msra.mxu0 0
    %952 = vmatprep.subr.bf16.mxu0 0
    %953 = vmatpush1.bf16.msra.mxu0 0
    %954 = vmatprep.subr.bf16.mxu0 0
    %955 = vmatpush1.bf16.msra.mxu0 0
    %956 = vmatprep.subr.bf16.mxu0 0
    %957 = vmatpush1.bf16.msra.mxu0 0
    %958 = vmatprep.subr.bf16.mxu0 0
    %959 = vmatpush1.bf16.msra.mxu0 0
    %960 = vmatprep.subr.bf16.mxu0 0
    %961 = vmatpush1.bf16.msra.mxu0 0
    %962 = vmatprep.subr.bf16.mxu0 0
    %963 = vmatpush1.bf16.msra.mxu0 0
    %964 = vmatprep.subr.bf16.mxu0 0
    %965 = vmatpush1.bf16.msra.mxu0 0
    %966 = vmatprep.subr.bf16.mxu0 0
    %967 = vmatpush1.bf16.msra.mxu0 0
    %968 = vmatprep.subr.bf16.mxu0 0
    %969 = vmatpush1.bf16.msra.mxu0 0
    %970 = vmatprep.mubr.bf16.mxu0 0
    %971 = vmatmul.mubr.bf16.gmra.mrb[0].mxu0 %v608
    %v972 = vpop.f32.mrb[0].mxu0
    %v973 = vadd.f32 %v193, %v972
    %v974 = vpop.f32.mrb[0].mxu0
    %v975 = vadd.f32 %v197, %v974
    %v976 = vpop.f32.mrb[0].mxu0
    %v977 = vpop.f32.mrb[0].mxu0
    %978 = vdwg.mxu0
    %979 = vmatprep.subr.bf16.mxu0 %v497
    %980 = vmatpush1.bf16.msra.mxu0 %v496
    %981 = vmatprep.subr.bf16.mxu0 %v529
    %982 = vmatpush1.bf16.msra.mxu0 %v528
    %983 = vmatprep.subr.bf16.mxu0 0
    %984 = vmatpush1.bf16.msra.mxu0 0
    %985 = vmatprep.subr.bf16.mxu0 0
    %986 = vmatpush1.bf16.msra.mxu0 0
    %987 = vmatprep.subr.bf16.mxu0 0
    %988 = vmatpush1.bf16.msra.mxu0 0
    %989 = vmatprep.subr.bf16.mxu0 0
    %990 = vmatpush1.bf16.msra.mxu0 0
    %991 = vmatprep.subr.bf16.mxu0 0
    %992 = vmatpush1.bf16.msra.mxu0 0
    %993 = vmatprep.subr.bf16.mxu0 0
    %994 = vmatpush1.bf16.msra.mxu0 0
    %995 = vmatprep.subr.bf16.mxu0 0
    %996 = vmatpush1.bf16.msra.mxu0 0
    %997 = vmatprep.subr.bf16.mxu0 0
    %998 = vmatpush1.bf16.msra.mxu0 0
    %999 = vmatprep.subr.bf16.mxu0 0
    %1000 = vmatpush1.bf16.msra.mxu0 0
    %1001 = vmatprep.subr.bf16.mxu0 0
    %1002 = vmatpush1.bf16.msra.mxu0 0
    %1003 = vmatprep.subr.bf16.mxu0 0
    %1004 = vmatpush1.bf16.msra.mxu0 0
    %1005 = vmatprep.subr.bf16.mxu0 0
    %1006 = vmatpush1.bf16.msra.mxu0 0
    %1007 = vmatprep.subr.bf16.mxu0 0
    %1008 = vmatpush1.bf16.msra.mxu0 0
    %1009 = vmatprep.subr.bf16.mxu0 0
    %1010 = vmatpush1.bf16.msra.mxu0 0
    %1011 = vmatprep.mubr.bf16.mxu0 0
    %1012 = vmatmul.mubr.bf16.gmra.mrb[0].mxu0 %v608
    %v1013 = vpop.f32.mrb[0].mxu0
    %v1014 = vadd.f32 %v201, %v1013
    %v1015 = vpop.f32.mrb[0].mxu0
    %v1016 = vadd.f32 %v205, %v1015
    %v1017 = vpop.f32.mrb[0].mxu0
    %v1018 = vpop.f32.mrb[0].mxu0
    %1019 = vdwg.mxu0
    %1020 = vmatprep.subr.bf16.mxu0 %v499
    %1021 = vmatpush1.bf16.msra.mxu0 %v498
    %1022 = vmatprep.subr.bf16.mxu0 %v531
    %1023 = vmatpush1.bf16.msra.mxu0 %v530
    %1024 = vmatprep.subr.bf16.mxu0 0
    %1025 = vmatpush1.bf16.msra.mxu0 0
    %1026 = vmatprep.subr.bf16.mxu0 0
    %1027 = vmatpush1.bf16.msra.mxu0 0
    %1028 = vmatprep.subr.bf16.mxu0 0
    %1029 = vmatpush1.bf16.msra.mxu0 0
    %1030 = vmatprep.subr.bf16.mxu0 0
    %1031 = vmatpush1.bf16.msra.mxu0 0
    %1032 = vmatprep.subr.bf16.mxu0 0
    %1033 = vmatpush1.bf16.msra.mxu0 0
    %1034 = vmatprep.subr.bf16.mxu0 0
    %1035 = vmatpush1.bf16.msra.mxu0 0
    %1036 = vmatprep.subr.bf16.mxu0 0
    %1037 = vmatpush1.bf16.msra.mxu0 0
    %1038 = vmatprep.subr.bf16.mxu0 0
    %1039 = vmatpush1.bf16.msra.mxu0 0
    %1040 = vmatprep.subr.bf16.mxu0 0
    %1041 = vmatpush1.bf16.msra.mxu0 0
    %1042 = vmatprep.subr.bf16.mxu0 0
    %1043 = vmatpush1.bf16.msra.mxu0 0
    %1044 = vmatprep.subr.bf16.mxu0 0
    %1045 = vmatpush1.bf16.msra.mxu0 0
    %1046 = vmatprep.subr.bf16.mxu0 0
    %1047 = vmatpush1.bf16.msra.mxu0 0
    %1048 = vmatprep.subr.bf16.mxu0 0
    %1049 = vmatpush1.bf16.msra.mxu0 0
    %1050 = vmatprep.subr.bf16.mxu0 0
    %1051 = vmatpush1.bf16.msra.mxu0 0
    %1052 = vmatprep.mubr.bf16.mxu0 0
    %1053 = vmatmul.mubr.bf16.gmra.mrb[0].mxu0 %v608
    %v1054 = vpop.f32.mrb[0].mxu0
    %v1055 = vadd.f32 %v209, %v1054
    %v1056 = vpop.f32.mrb[0].mxu0
    %v1057 = vadd.f32 %v213, %v1056
    %v1058 = vpop.f32.mrb[0].mxu0
    %v1059 = vpop.f32.mrb[0].mxu0
    %1060 = vdwg.mxu0
    %1061 = vmatprep.subr.bf16.mxu0 %v501
    %1062 = vmatpush1.bf16.msra.mxu0 %v500
    %1063 = vmatprep.subr.bf16.mxu0 %v533
    %1064 = vmatpush1.bf16.msra.mxu0 %v532
    %1065 = vmatprep.subr.bf16.mxu0 0
    %1066 = vmatpush1.bf16.msra.mxu0 0
    %1067 = vmatprep.subr.bf16.mxu0 0
    %1068 = vmatpush1.bf16.msra.mxu0 0
    %1069 = vmatprep.subr.bf16.mxu0 0
    %1070 = vmatpush1.bf16.msra.mxu0 0
    %1071 = vmatprep.subr.bf16.mxu0 0
    %1072 = vmatpush1.bf16.msra.mxu0 0
    %1073 = vmatprep.subr.bf16.mxu0 0
    %1074 = vmatpush1.bf16.msra.mxu0 0
    %1075 = vmatprep.subr.bf16.mxu0 0
    %1076 = vmatpush1.bf16.msra.mxu0 0
    %1077 = vmatprep.subr.bf16.mxu0 0
    %1078 = vmatpush1.bf16.msra.mxu0 0
    %1079 = vmatprep.subr.bf16.mxu0 0
    %1080 = vmatpush1.bf16.msra.mxu0 0
    %1081 = vmatprep.subr.bf16.mxu0 0
    %1082 = vmatpush1.bf16.msra.mxu0 0
    %1083 = vmatprep.subr.bf16.mxu0 0
    %1084 = vmatpush1.bf16.msra.mxu0 0
    %1085 = vmatprep.subr.bf16.mxu0 0
    %1086 = vmatpush1.bf16.msra.mxu0 0
    %1087 = vmatprep.subr.bf16.mxu0 0
    %1088 = vmatpush1.bf16.msra.mxu0 0
    %1089 = vmatprep.subr.bf16.mxu0 0
    %1090 = vmatpush1.bf16.msra.mxu0 0
    %1091 = vmatprep.subr.bf16.mxu0 0
    %1092 = vmatpush1.bf16.msra.mxu0 0
    %1093 = vmatprep.mubr.bf16.mxu0 0
    %1094 = vmatmul.mubr.bf16.gmra.mrb[0].mxu0 %v608
    %v1095 = vpop.f32.mrb[0].mxu0
    %v1096 = vadd.f32 %v217, %v1095
    %v1097 = vpop.f32.mrb[0].mxu0
    %v1098 = vadd.f32 %v221, %v1097
    %v1099 = vpop.f32.mrb[0].mxu0
    %v1100 = vpop.f32.mrb[0].mxu0
    %1101 = vdwg.mxu0
    %1102 = vmatprep.subr.bf16.mxu0 %v503
    %1103 = vmatpush1.bf16.msra.mxu0 %v502
    %1104 = vmatprep.subr.bf16.mxu0 %v535
    %1105 = vmatpush1.bf16.msra.mxu0 %v534
    %1106 = vmatprep.subr.bf16.mxu0 0
    %1107 = vmatpush1.bf16.msra.mxu0 0
    %1108 = vmatprep.subr.bf16.mxu0 0
    %1109 = vmatpush1.bf16.msra.mxu0 0
    %1110 = vmatprep.subr.bf16.mxu0 0
    %1111 = vmatpush1.bf16.msra.mxu0 0
    %1112 = vmatprep.subr.bf16.mxu0 0
    %1113 = vmatpush1.bf16.msra.mxu0 0
    %1114 = vmatprep.subr.bf16.mxu0 0
    %1115 = vmatpush1.bf16.msra.mxu0 0
    %1116 = vmatprep.subr.bf16.mxu0 0
    %1117 = vmatpush1.bf16.msra.mxu0 0
    %1118 = vmatprep.subr.bf16.mxu0 0
    %1119 = vmatpush1.bf16.msra.mxu0 0
    %1120 = vmatprep.subr.bf16.mxu0 0
    %1121 = vmatpush1.bf16.msra.mxu0 0
    %1122 = vmatprep.subr.bf16.mxu0 0
    %1123 = vmatpush1.bf16.msra.mxu0 0
    %1124 = vmatprep.subr.bf16.mxu0 0
    %1125 = vmatpush1.bf16.msra.mxu0 0
    %1126 = vmatprep.subr.bf16.mxu0 0
    %1127 = vmatpush1.bf16.msra.mxu0 0
    %1128 = vmatprep.subr.bf16.mxu0 0
    %1129 = vmatpush1.bf16.msra.mxu0 0
    %1130 = vmatprep.subr.bf16.mxu0 0
    %1131 = vmatpush1.bf16.msra.mxu0 0
    %1132 = vmatprep.subr.bf16.mxu0 0
    %1133 = vmatpush1.bf16.msra.mxu0 0
    %1134 = vmatprep.mubr.bf16.mxu0 0
    %1135 = vmatmul.mubr.bf16.gmra.mrb[0].mxu0 %v608
    %v1136 = vpop.f32.mrb[0].mxu0
    %v1137 = vadd.f32 %v225, %v1136
    %v1138 = vpop.f32.mrb[0].mxu0
    %v1139 = vadd.f32 %v229, %v1138
    %v1140 = vpop.f32.mrb[0].mxu0
    %v1141 = vpop.f32.mrb[0].mxu0
    %1142 = vdwg.mxu0
    %1143 = vmatprep.subr.bf16.mxu0 %v505
    %1144 = vmatpush1.bf16.msra.mxu0 %v504
    %1145 = vmatprep.subr.bf16.mxu0 %v537
    %1146 = vmatpush1.bf16.msra.mxu0 %v536
    %1147 = vmatprep.subr.bf16.mxu0 0
    %1148 = vmatpush1.bf16.msra.mxu0 0
    %1149 = vmatprep.subr.bf16.mxu0 0
    %1150 = vmatpush1.bf16.msra.mxu0 0
    %1151 = vmatprep.subr.bf16.mxu0 0
    %1152 = vmatpush1.bf16.msra.mxu0 0
    %1153 = vmatprep.subr.bf16.mxu0 0
    %1154 = vmatpush1.bf16.msra.mxu0 0
    %1155 = vmatprep.subr.bf16.mxu0 0
    %1156 = vmatpush1.bf16.msra.mxu0 0
    %1157 = vmatprep.subr.bf16.mxu0 0
    %1158 = vmatpush1.bf16.msra.mxu0 0
    %1159 = vmatprep.subr.bf16.mxu0 0
    %1160 = vmatpush1.bf16.msra.mxu0 0
    %1161 = vmatprep.subr.bf16.mxu0 0
    %1162 = vmatpush1.bf16.msra.mxu0 0
    %1163 = vmatprep.subr.bf16.mxu0 0
    %1164 = vmatpush1.bf16.msra.mxu0 0
    %1165 = vmatprep.subr.bf16.mxu0 0
    %1166 = vmatpush1.bf16.msra.mxu0 0
    %1167 = vmatprep.subr.bf16.mxu0 0
    %1168 = vmatpush1.bf16.msra.mxu0 0
    %1169 = vmatprep.subr.bf16.mxu0 0
    %1170 = vmatpush1.bf16.msra.mxu0 0
    %1171 = vmatprep.subr.bf16.mxu0 0
    %1172 = vmatpush1.bf16.msra.mxu0 0
    %1173 = vmatprep.subr.bf16.mxu0 0
    %1174 = vmatpush1.bf16.msra.mxu0 0
    %1175 = vmatprep.mubr.bf16.mxu0 0
    %1176 = vmatmul.mubr.bf16.gmra.mrb[0].mxu0 %v608
    %v1177 = vpop.f32.mrb[0].mxu0
    %v1178 = vadd.f32 %v233, %v1177
    %v1179 = vpop.f32.mrb[0].mxu0
    %v1180 = vadd.f32 %v237, %v1179
    %v1181 = vpop.f32.mrb[0].mxu0
    %v1182 = vpop.f32.mrb[0].mxu0
    %1183 = vdwg.mxu0
    %1184 = vmatprep.subr.bf16.mxu0 %v507
    %1185 = vmatpush1.bf16.msra.mxu0 %v506
    %1186 = vmatprep.subr.bf16.mxu0 %v539
    %1187 = vmatpush1.bf16.msra.mxu0 %v538
    %1188 = vmatprep.subr.bf16.mxu0 0
    %1189 = vmatpush1.bf16.msra.mxu0 0
    %1190 = vmatprep.subr.bf16.mxu0 0
    %1191 = vmatpush1.bf16.msra.mxu0 0
    %1192 = vmatprep.subr.bf16.mxu0 0
    %1193 = vmatpush1.bf16.msra.mxu0 0
    %1194 = vmatprep.subr.bf16.mxu0 0
    %1195 = vmatpush1.bf16.msra.mxu0 0
    %1196 = vmatprep.subr.bf16.mxu0 0
    %1197 = vmatpush1.bf16.msra.mxu0 0
    %1198 = vmatprep.subr.bf16.mxu0 0
    %1199 = vmatpush1.bf16.msra.mxu0 0
    %1200 = vmatprep.subr.bf16.mxu0 0
    %1201 = vmatpush1.bf16.msra.mxu0 0
    %1202 = vmatprep.subr.bf16.mxu0 0
    %1203 = vmatpush1.bf16.msra.mxu0 0
    %1204 = vmatprep.subr.bf16.mxu0 0
    %1205 = vmatpush1.bf16.msra.mxu0 0
    %1206 = vmatprep.subr.bf16.mxu0 0
    %1207 = vmatpush1.bf16.msra.mxu0 0
    %1208 = vmatprep.subr.bf16.mxu0 0
    %1209 = vmatpush1.bf16.msra.mxu0 0
    %1210 = vmatprep.subr.bf16.mxu0 0
    %1211 = vmatpush1.bf16.msra.mxu0 0
    %1212 = vmatprep.subr.bf16.mxu0 0
    %1213 = vmatpush1.bf16.msra.mxu0 0
    %1214 = vmatprep.subr.bf16.mxu0 0
    %1215 = vmatpush1.bf16.msra.mxu0 0
    %1216 = vmatprep.mubr.bf16.mxu0 0
    %1217 = vmatmul.mubr.bf16.gmra.mrb[0].mxu0 %v608
    %v1218 = vpop.f32.mrb[0].mxu0
    %v1219 = vadd.f32 %v241, %v1218
    %v1220 = vpop.f32.mrb[0].mxu0
    %v1221 = vadd.f32 %v245, %v1220
    %v1222 = vpop.f32.mrb[0].mxu0
    %v1223 = vpop.f32.mrb[0].mxu0
    %1224 = vdwg.mxu0
    %1225 = vmatprep.subr.bf16.mxu0 %v509
    %1226 = vmatpush1.bf16.msra.mxu0 %v508
    %1227 = vmatprep.subr.bf16.mxu0 %v541
    %1228 = vmatpush1.bf16.msra.mxu0 %v540
    %1229 = vmatprep.subr.bf16.mxu0 0
    %1230 = vmatpush1.bf16.msra.mxu0 0
    %1231 = vmatprep.subr.bf16.mxu0 0
    %1232 = vmatpush1.bf16.msra.mxu0 0
    %1233 = vmatprep.subr.bf16.mxu0 0
    %1234 = vmatpush1.bf16.msra.mxu0 0
    %1235 = vmatprep.subr.bf16.mxu0 0
    %1236 = vmatpush1.bf16.msra.mxu0 0
    %1237 = vmatprep.subr.bf16.mxu0 0
    %1238 = vmatpush1.bf16.msra.mxu0 0
    %1239 = vmatprep.subr.bf16.mxu0 0
    %1240 = vmatpush1.bf16.msra.mxu0 0
    %1241 = vmatprep.subr.bf16.mxu0 0
    %1242 = vmatpush1.bf16.msra.mxu0 0
    %1243 = vmatprep.subr.bf16.mxu0 0
    %1244 = vmatpush1.bf16.msra.mxu0 0
    %1245 = vmatprep.subr.bf16.mxu0 0
    %1246 = vmatpush1.bf16.msra.mxu0 0
    %1247 = vmatprep.subr.bf16.mxu0 0
    %1248 = vmatpush1.bf16.msra.mxu0 0
    %1249 = vmatprep.subr.bf16.mxu0 0
    %1250 = vmatpush1.bf16.msra.mxu0 0
    %1251 = vmatprep.subr.bf16.mxu0 0
    %1252 = vmatpush1.bf16.msra.mxu0 0
    %1253 = vmatprep.subr.bf16.mxu0 0
    %1254 = vmatpush1.bf16.msra.mxu0 0
    %1255 = vmatprep.subr.bf16.mxu0 0
    %1256 = vmatpush1.bf16.msra.mxu0 0
    %1257 = vmatprep.mubr.bf16.mxu0 0
    %1258 = vmatmul.mubr.bf16.gmra.mrb[0].mxu0 %v608
    %v1259 = vpop.f32.mrb[0].mxu0
    %v1260 = vadd.f32 %v249, %v1259
    %v1261 = vpop.f32.mrb[0].mxu0
    %v1262 = vadd.f32 %v253, %v1261
    %v1263 = vpop.f32.mrb[0].mxu0
    %v1264 = vpop.f32.mrb[0].mxu0
    %1265 = vdwg.mxu0
    %v1266 = vxor.u32 %v645, 2147483648
    %v1267 = vxor.u32 %v647, 2147483648
    %v1268 = vxor.u32 %v686, 2147483648
    %v1269 = vxor.u32 %v688, 2147483648
    %v1270 = vxor.u32 %v727, 2147483648
    %v1271 = vxor.u32 %v729, 2147483648
    %v1272 = vxor.u32 %v768, 2147483648
    %v1273 = vxor.u32 %v770, 2147483648
    %v1274 = vxor.u32 %v809, 2147483648
    %v1275 = vxor.u32 %v811, 2147483648
    %v1276 = vxor.u32 %v850, 2147483648
    %v1277 = vxor.u32 %v852, 2147483648
    %v1278 = vxor.u32 %v891, 2147483648
    %v1279 = vxor.u32 %v893, 2147483648
    %v1280 = vxor.u32 %v932, 2147483648
    %v1281 = vxor.u32 %v934, 2147483648
    %v1282 = vxor.u32 %v973, 2147483648
    %v1283 = vxor.u32 %v975, 2147483648
    %v1284 = vxor.u32 %v1014, 2147483648
    %v1285 = vxor.u32 %v1016, 2147483648
    %v1286 = vxor.u32 %v1055, 2147483648
    %v1287 = vxor.u32 %v1057, 2147483648
    %v1288 = vxor.u32 %v1096, 2147483648
    %v1289 = vxor.u32 %v1098, 2147483648
    %v1290 = vxor.u32 %v1137, 2147483648
    %v1291 = vxor.u32 %v1139, 2147483648
    %v1292 = vxor.u32 %v1178, 2147483648
    %v1293 = vxor.u32 %v1180, 2147483648
    %v1294 = vxor.u32 %v1219, 2147483648
    %v1295 = vxor.u32 %v1221, 2147483648
    %v1296 = vxor.u32 %v1260, 2147483648
    %v1297 = vxor.u32 %v1262, 2147483648
    %v1298 = vmul.f32 %v1266, 1.442695
    %v1299 = vpow.pop %v1298
    %v1300 = vmul.f32 %v1267, 1.442695
    %v1301 = vpow.pop %v1300
    %v1302 = vmul.f32 %v1268, 1.442695
    %v1303 = vpow.pop %v1302
    %v1304 = vmul.f32 %v1269, 1.442695
    %v1305 = vpow.pop %v1304
    %v1306 = vmul.f32 %v1270, 1.442695
    %v1307 = vpow.pop %v1306
    %v1308 = vmul.f32 %v1271, 1.442695
    %v1309 = vpow.pop %v1308
    %v1310 = vmul.f32 %v1272, 1.442695
    %v1311 = vpow.pop %v1310
    %v1312 = vmul.f32 %v1273, 1.442695
    %v1313 = vpow.pop %v1312
    %v1314 = vmul.f32 %v1274, 1.442695
    %v1315 = vpow.pop %v1314
    %v1316 = vmul.f32 %v1275, 1.442695
    %v1317 = vpow.pop %v1316
    %v1318 = vmul.f32 %v1276, 1.442695
    %v1319 = vpow.pop %v1318
    %v1320 = vmul.f32 %v1277, 1.442695
    %v1321 = vpow.pop %v1320
    %v1322 = vmul.f32 %v1278, 1.442695
    %v1323 = vpow.pop %v1322
    %v1324 = vmul.f32 %v1279, 1.442695
    %v1325 = vpow.pop %v1324
    %v1326 = vmul.f32 %v1280, 1.442695
    %v1327 = vpow.pop %v1326
    %v1328 = vmul.f32 %v1281, 1.442695
    %v1329 = vpow.pop %v1328
    %v1330 = vmul.f32 %v1282, 1.442695
    %v1331 = vpow.pop %v1330
    %v1332 = vmul.f32 %v1283, 1.442695
    %v1333 = vpow.pop %v1332
    %v1334 = vmul.f32 %v1284, 1.442695
    %v1335 = vpow.pop %v1334
    %v1336 = vmul.f32 %v1285, 1.442695
    %v1337 = vpow.pop %v1336
    %v1338 = vmul.f32 %v1286, 1.442695
    %v1339 = vpow.pop %v1338
    %v1340 = vmul.f32 %v1287, 1.442695
    %v1341 = vpow.pop %v1340
    %v1342 = vmul.f32 %v1288, 1.442695
    %v1343 = vpow.pop %v1342
    %v1344 = vmul.f32 %v1289, 1.442695
    %v1345 = vpow.pop %v1344
    %v1346 = vmul.f32 %v1290, 1.442695
    %v1347 = vpow.pop %v1346
    %v1348 = vmul.f32 %v1291, 1.442695
    %v1349 = vpow.pop %v1348
    %v1350 = vmul.f32 %v1292, 1.442695
    %v1351 = vpow.pop %v1350
    %v1352 = vmul.f32 %v1293, 1.442695
    %v1353 = vpow.pop %v1352
    %v1354 = vmul.f32 %v1294, 1.442695
    %v1355 = vpow.pop %v1354
    %v1356 = vmul.f32 %v1295, 1.442695
    %v1357 = vpow.pop %v1356
    %v1358 = vmul.f32 %v1296, 1.442695
    %v1359 = vpow.pop %v1358
    %v1360 = vmul.f32 %v1297, 1.442695
    %v1361 = vpow.pop %v1360
    %v1362 = vadd.f32 %v1299, 1.0
    %v1363 = vadd.f32 %v1301, 1.0
    %v1364 = vadd.f32 %v1303, 1.0
    %v1365 = vadd.f32 %v1305, 1.0
    %v1366 = vadd.f32 %v1307, 1.0
    %v1367 = vadd.f32 %v1309, 1.0
    %v1368 = vadd.f32 %v1311, 1.0
    %v1369 = vadd.f32 %v1313, 1.0
    %v1370 = vadd.f32 %v1315, 1.0
    %v1371 = vadd.f32 %v1317, 1.0
    %v1372 = vadd.f32 %v1319, 1.0
    %v1373 = vadd.f32 %v1321, 1.0
    %v1374 = vadd.f32 %v1323, 1.0
    %v1375 = vadd.f32 %v1325, 1.0
    %v1376 = vadd.f32 %v1327, 1.0
    %v1377 = vadd.f32 %v1329, 1.0
    %v1378 = vadd.f32 %v1331, 1.0
    %v1379 = vadd.f32 %v1333, 1.0
    %v1380 = vadd.f32 %v1335, 1.0
    %v1381 = vadd.f32 %v1337, 1.0
    %v1382 = vadd.f32 %v1339, 1.0
    %v1383 = vadd.f32 %v1341, 1.0
    %v1384 = vadd.f32 %v1343, 1.0
    %v1385 = vadd.f32 %v1345, 1.0
    %v1386 = vadd.f32 %v1347, 1.0
    %v1387 = vadd.f32 %v1349, 1.0
    %v1388 = vadd.f32 %v1351, 1.0
    %v1389 = vadd.f32 %v1353, 1.0
    %v1390 = vadd.f32 %v1355, 1.0
    %v1391 = vadd.f32 %v1357, 1.0
    %v1392 = vadd.f32 %v1359, 1.0
    %v1393 = vadd.f32 %v1361, 1.0
    %v1394 = vrcp.pop %v1362
    %v1395 = vmul.f32 1.0, %v1394
    %v1396 = vrcp.pop %v1363
    %v1397 = vmul.f32 1.0, %v1396
    %v1398 = vrcp.pop %v1364
    %v1399 = vmul.f32 1.0, %v1398
    %v1400 = vrcp.pop %v1365
    %v1401 = vmul.f32 1.0, %v1400
    %v1402 = vrcp.pop %v1366
    %v1403 = vmul.f32 1.0, %v1402
    %v1404 = vrcp.pop %v1367
    %v1405 = vmul.f32 1.0, %v1404
    %v1406 = vrcp.pop %v1368
    %v1407 = vmul.f32 1.0, %v1406
    %v1408 = vrcp.pop %v1369
    %v1409 = vmul.f32 1.0, %v1408
    %v1410 = vrcp.pop %v1370
    %v1411 = vmul.f32 1.0, %v1410
    %v1412 = vrcp.pop %v1371
    %v1413 = vmul.f32 1.0, %v1412
    %v1414 = vrcp.pop %v1372
    %v1415 = vmul.f32 1.0, %v1414
    %v1416 = vrcp.pop %v1373
    %v1417 = vmul.f32 1.0, %v1416
    %v1418 = vrcp.pop %v1374
    %v1419 = vmul.f32 1.0, %v1418
    %v1420 = vrcp.pop %v1375
    %v1421 = vmul.f32 1.0, %v1420
    %v1422 = vrcp.pop %v1376
    %v1423 = vmul.f32 1.0, %v1422
    %v1424 = vrcp.pop %v1377
    %v1425 = vmul.f32 1.0, %v1424
    %v1426 = vrcp.pop %v1378
    %v1427 = vmul.f32 1.0, %v1426
    %v1428 = vrcp.pop %v1379
    %v1429 = vmul.f32 1.0, %v1428
    %v1430 = vrcp.pop %v1380
    %v1431 = vmul.f32 1.0, %v1430
    %v1432 = vrcp.pop %v1381
    %v1433 = vmul.f32 1.0, %v1432
    %v1434 = vrcp.pop %v1382
    %v1435 = vmul.f32 1.0, %v1434
    %v1436 = vrcp.pop %v1383
    %v1437 = vmul.f32 1.0, %v1436
    %v1438 = vrcp.pop %v1384
    %v1439 = vmul.f32 1.0, %v1438
    %v1440 = vrcp.pop %v1385
    %v1441 = vmul.f32 1.0, %v1440
    %v1442 = vrcp.pop %v1386
    %v1443 = vmul.f32 1.0, %v1442
    %v1444 = vrcp.pop %v1387
    %v1445 = vmul.f32 1.0, %v1444
    %v1446 = vrcp.pop %v1388
    %v1447 = vmul.f32 1.0, %v1446
    %v1448 = vrcp.pop %v1389
    %v1449 = vmul.f32 1.0, %v1448
    %v1450 = vrcp.pop %v1390
    %v1451 = vmul.f32 1.0, %v1450
    %v1452 = vrcp.pop %v1391
    %v1453 = vmul.f32 1.0, %v1452
    %v1454 = vrcp.pop %v1392
    %v1455 = vmul.f32 1.0, %v1454
    %v1456 = vrcp.pop %v1393
    %v1457 = vmul.f32 1.0, %v1456
    %v1490 = vcombine.low %v1395, %v1397
    %v1491 = vcombine.low %v1399, %v1401
    %v1493 = vunpack.c.l.s4 1983009808
    %v1494 = vunpack.c.0.s8 %v1493
    %v1495 = vlaneseq
    %v1496 = vshrl.u32 %v1495, 7
    %v1497 = vsub.s32 %v1494, %v1496
    %v1498 = vrot.slane %v1490, %v1497
    %v1500 = vunpack.c.l.s4 1983009808
    %v1501 = vunpack.c.0.s8 %v1500
    %v1502 = vlaneseq
    %v1503 = vshrl.u32 %v1502, 7
    %v1504 = vsub.s32 %v1501, %v1503
    %v1505 = vrot.slane %v1491, %v1504
    %v1506 = vcombine.low %v1498, %v1505
    %v1507 = vcombine.low %v1403, %v1405
    %v1508 = vcombine.low %v1407, %v1409
    %v1510 = vunpack.c.l.s4 1983009808
    %v1511 = vunpack.c.0.s8 %v1510
    %v1512 = vlaneseq
    %v1513 = vshrl.u32 %v1512, 7
    %v1514 = vsub.s32 %v1511, %v1513
    %v1515 = vrot.slane %v1507, %v1514
    %v1517 = vunpack.c.l.s4 1983009808
    %v1518 = vunpack.c.0.s8 %v1517
    %v1519 = vlaneseq
    %v1520 = vshrl.u32 %v1519, 7
    %v1521 = vsub.s32 %v1518, %v1520
    %v1522 = vrot.slane %v1508, %v1521
    %v1523 = vcombine.low %v1515, %v1522
    %v1524 = vcombine.low %v1411, %v1413
    %v1525 = vcombine.low %v1415, %v1417
    %v1527 = vunpack.c.l.s4 1983009808
    %v1528 = vunpack.c.0.s8 %v1527
    %v1529 = vlaneseq
    %v1530 = vshrl.u32 %v1529, 7
    %v1531 = vsub.s32 %v1528, %v1530
    %v1532 = vrot.slane %v1524, %v1531
    %v1534 = vunpack.c.l.s4 1983009808
    %v1535 = vunpack.c.0.s8 %v1534
    %v1536 = vlaneseq
    %v1537 = vshrl.u32 %v1536, 7
    %v1538 = vsub.s32 %v1535, %v1537
    %v1539 = vrot.slane %v1525, %v1538
    %v1540 = vcombine.low %v1532, %v1539
    %v1541 = vcombine.low %v1419, %v1421
    %v1542 = vcombine.low %v1423, %v1425
    %v1544 = vunpack.c.l.s4 1983009808
    %v1545 = vunpack.c.0.s8 %v1544
    %v1546 = vlaneseq
    %v1547 = vshrl.u32 %v1546, 7
    %v1548 = vsub.s32 %v1545, %v1547
    %v1549 = vrot.slane %v1541, %v1548
    %v1551 = vunpack.c.l.s4 1983009808
    %v1552 = vunpack.c.0.s8 %v1551
    %v1553 = vlaneseq
    %v1554 = vshrl.u32 %v1553, 7
    %v1555 = vsub.s32 %v1552, %v1554
    %v1556 = vrot.slane %v1542, %v1555
    %v1557 = vcombine.low %v1549, %v1556
    %v1558 = vcombine.low %v1427, %v1429
    %v1559 = vcombine.low %v1431, %v1433
    %v1561 = vunpack.c.l.s4 1983009808
    %v1562 = vunpack.c.0.s8 %v1561
    %v1563 = vlaneseq
    %v1564 = vshrl.u32 %v1563, 7
    %v1565 = vsub.s32 %v1562, %v1564
    %v1566 = vrot.slane %v1558, %v1565
    %v1568 = vunpack.c.l.s4 1983009808
    %v1569 = vunpack.c.0.s8 %v1568
    %v1570 = vlaneseq
    %v1571 = vshrl.u32 %v1570, 7
    %v1572 = vsub.s32 %v1569, %v1571
    %v1573 = vrot.slane %v1559, %v1572
    %v1574 = vcombine.low %v1566, %v1573
    %v1575 = vcombine.low %v1435, %v1437
    %v1576 = vcombine.low %v1439, %v1441
    %v1578 = vunpack.c.l.s4 1983009808
    %v1579 = vunpack.c.0.s8 %v1578
    %v1580 = vlaneseq
    %v1581 = vshrl.u32 %v1580, 7
    %v1582 = vsub.s32 %v1579, %v1581
    %v1583 = vrot.slane %v1575, %v1582
    %v1585 = vunpack.c.l.s4 1983009808
    %v1586 = vunpack.c.0.s8 %v1585
    %v1587 = vlaneseq
    %v1588 = vshrl.u32 %v1587, 7
    %v1589 = vsub.s32 %v1586, %v1588
    %v1590 = vrot.slane %v1576, %v1589
    %v1591 = vcombine.low %v1583, %v1590
    %v1592 = vcombine.low %v1443, %v1445
    %v1593 = vcombine.low %v1447, %v1449
    %v1595 = vunpack.c.l.s4 1983009808
    %v1596 = vunpack.c.0.s8 %v1595
    %v1597 = vlaneseq
    %v1598 = vshrl.u32 %v1597, 7
    %v1599 = vsub.s32 %v1596, %v1598
    %v1600 = vrot.slane %v1592, %v1599
    %v1602 = vunpack.c.l.s4 1983009808
    %v1603 = vunpack.c.0.s8 %v1602
    %v1604 = vlaneseq
    %v1605 = vshrl.u32 %v1604, 7
    %v1606 = vsub.s32 %v1603, %v1605
    %v1607 = vrot.slane %v1593, %v1606
    %v1608 = vcombine.low %v1600, %v1607
    %v1609 = vcombine.low %v1451, %v1453
    %v1610 = vcombine.low %v1455, %v1457
    %v1612 = vunpack.c.l.s4 1983009808
    %v1613 = vunpack.c.0.s8 %v1612
    %v1614 = vlaneseq
    %v1615 = vshrl.u32 %v1614, 7
    %v1616 = vsub.s32 %v1613, %v1615
    %v1617 = vrot.slane %v1609, %v1616
    %v1619 = vunpack.c.l.s4 1983009808
    %v1620 = vunpack.c.0.s8 %v1619
    %v1621 = vlaneseq
    %v1622 = vshrl.u32 %v1621, 7
    %v1623 = vsub.s32 %v1620, %v1622
    %v1624 = vrot.slane %v1610, %v1623
    %v1625 = vcombine.low %v1617, %v1624
    %1634 = vst [vmem:[%s3] sm:$0xff] %v1506
    %1635 = vst [vmem:[%s3 + $0x8] sm:$0xff] %v1523
    %1636 = vst [vmem:[%s3 + $0x10] sm:$0xff] %v1540
    %1637 = vst [vmem:[%s3 + $0x18] sm:$0xff] %v1557
    %1638 = vst [vmem:[%s3 + $0x20] sm:$0xff] %v1574
    %1639 = vst [vmem:[%s3 + $0x28] sm:$0xff] %v1591
    %1640 = vst [vmem:[%s3 + $0x30] sm:$0xff] %v1608
    %1641 = vst [vmem:[%s3 + $0x38] sm:$0xff] %v1625
    // Predicated region
    $region26: #{autoencoder_gen_forward.1} parent=1 // pred_check
      _
    $region27: #{autoencoder_gen_forward.1} parent=1 // pred_check_branch
      %1643 = sbr.rel (0) target = $region29
    $region28: #{autoencoder_gen_forward.1} parent=1 // pred_region
      _
    $region29: #{autoencoder_gen_forward.1} parent=1 // pred_fallthru
      _
    // Predicated region
    $region30: #{autoencoder_gen_forward.1} parent=1 // pred_check
      _
    $region31: #{autoencoder_gen_forward.1} parent=1 // pred_check_branch
      %1645 = sbr.rel (0) target = $region33
    $region32: #{autoencoder_gen_forward.1} parent=1 // pred_region
      _
    $region33: #{autoencoder_gen_forward.1} parent=1 // pred_fallthru
      _
    %1646 = vsyncpa [#allocation3], 1
    %1647 = vsyncpa [#allocation5], 1

</llo_original>
